<compile_context>
chip_gen: v7x
topology: tpu7x:2x2x1
jax: 0.10.0
libtpu: 0.0.40
codegen_flags: <defaults>
</compile_context>

<pallas_src>
import functools

import jax
import jax.numpy as jnp
from jax.experimental import pallas as pl
from jax.experimental.pallas import tpu as pltpu

F32 = jnp.float32


def _rup(x, m):
    return (x + m - 1) // m * m


def _ntxent_kernel(x1_ref, x2_ref, o_ref, x2n_ref, acc_ref, *,
                   n_valid, inv_temp, eps):
    i = pl.program_id(0)
    tb = x1_ref.shape[0]

    @pl.when(i == 0)
    def _init():
        acc_ref[...] = jnp.zeros_like(acc_ref)
        x2 = x2_ref[...]
        n2 = jnp.sum(x2 * x2, axis=-1, keepdims=True)
        # F.normalize semantics: x / max(||x||, eps)
        x2n_ref[...] = x2 * jax.lax.rsqrt(jnp.maximum(n2, eps * eps))

    x1 = x1_ref[...]
    n1 = jnp.sum(x1 * x1, axis=-1, keepdims=True)
    x1n = x1 * jax.lax.rsqrt(jnp.maximum(n1, eps * eps))

    # (tb, Bp) similarity tile on the MXU; contraction over the feature dim.
    sim = jax.lax.dot_general(
        x1n, x2n_ref[...], (((1,), (1,)), ((), ())),
        preferred_element_type=jnp.float32) * inv_temp

    col = jax.lax.broadcasted_iota(jnp.int32, sim.shape, 1)
    row = i * tb + jax.lax.broadcasted_iota(jnp.int32, sim.shape, 0)

    # Mask padded x2 rows (columns of sim) with a large negative *finite* value.
    sim = jnp.where(col < n_valid, sim, jnp.float32(-1e30))

    # Row-max subtraction + log-sum-exp (matches the reference's explicit
    # max-subtraction; cross entropy is shift-invariant).
    m = jnp.max(sim, axis=-1, keepdims=True)
    lse = jnp.log(jnp.sum(jnp.exp(sim - m), axis=-1, keepdims=True))
    diag = jnp.sum(jnp.where(col == row, sim, 0.0), axis=-1, keepdims=True)

    loss_row = m - diag + lse                   # -log softmax at label == row idx
    valid = row[:, :1] < n_valid                # mask padded x1 rows
    acc_ref[...] += jnp.sum(jnp.where(valid, loss_row, 0.0),
                            axis=0, keepdims=True)

    @pl.when(i == pl.num_programs(0) - 1)
    def _finalize():
        o_ref[...] = acc_ref[...] * jnp.float32(1.0 / n_valid)


def ntxent_loss(x1, x2, temperature=0.5, eps=1e-12, block_rows=256):
    """loss = CrossEntropy(normalize(x1) @ normalize(x2).T / T, labels=arange(B))."""
    assert x1.shape == x2.shape and x1.ndim == 2
    B, D = x1.shape

    Dp = _rup(max(D, 128), 128)           # lane-dense feature dim
    Bp = _rup(max(B, 8), 8)               # sublane-aligned batch dim
    tb = min(_rup(block_rows, 8), Bp)     # rows of x1 processed per grid step
    Bp = _rup(Bp, tb)

    x1p = jnp.pad(x1.astype(F32), ((0, Bp - B), (0, Dp - D)))
    x2p = jnp.pad(x2.astype(F32), ((0, Bp - B), (0, Dp - D)))

    kernel = functools.partial(
        _ntxent_kernel, n_valid=B,
        inv_temp=float(1.0 / temperature), eps=float(eps))

    out = pl.pallas_call(
        kernel,
        out_shape=jax.ShapeDtypeStruct((1, 1), F32),
        grid_spec=pltpu.PrefetchScalarGridSpec(
            num_scalar_prefetch=0,
            grid=(Bp // tb,),
            in_specs=[pl.BlockSpec((tb, Dp), lambda i: (i, 0)),   # x1 row tile
                      pl.BlockSpec((Bp, Dp), lambda i: (0, 0))],  # x2 resident
            out_specs=pl.BlockSpec((1, 1), lambda i: (0, 0)),     # scalar loss
            scratch_shapes=[pltpu.VMEM((Bp, Dp), F32),            # normalized x2
                            pltpu.VMEM((1, 1), F32)]),            # loss accumulator
        compiler_params=pltpu.CompilerParams(
            dimension_semantics=("arbitrary",)),  # accumulator resident across grid
    )(x1p, x2p)
    return out[0, 0]


def _ntxent_reference(x1, x2, temperature=0.5, eps=1e-12):
    """Pure-JAX reference matching the PyTorch module."""
    x1n = x1 / jnp.maximum(jnp.linalg.norm(x1, axis=1, keepdims=True), eps)
    x2n = x2 / jnp.maximum(jnp.linalg.norm(x2, axis=1, keepdims=True), eps)
    sim = (x1n @ x2n.T) / temperature
    sim = sim - jnp.max(sim, axis=-1, keepdims=True)
    lse = jax.scipy.special.logsumexp(sim, axis=-1)
    return jnp.mean(lse - jnp.diag(sim))


if __name__ == "__main__":
    key = jax.random.PRNGKey(0)
    k1, k2 = jax.random.split(key)
    B, D = 8, 32                           # small shapes consistent with the module
    x1 = jax.random.normal(k1, (B, D), F32)
    x2 = jax.random.normal(k2, (B, D), F32)

    loss = ntxent_loss(x1, x2, temperature=0.5)
    loss = jax.block_until_ready(loss)

    expected = jax.block_until_ready(_ntxent_reference(x1, x2, temperature=0.5))
    assert loss.shape == ()
    assert bool(jnp.isfinite(loss)), loss
    assert bool(jnp.allclose(loss, expected, atol=1e-5, rtol=1e-5)), (loss, expected)
    print("KERNEL_OK")
</pallas_src>

<mosaic_0001>
module attributes {stable_mosaic.version = 11 : i64} {
  func.func @_ntxent_kernel(%arg0: i32, %arg1: memref<8x128xf32, #tpu.memory_space<vmem>>, %arg2: memref<8x128xf32, #tpu.memory_space<vmem>>, %arg3: memref<1x1xf32, #tpu.memory_space<vmem>>, %arg4: memref<8x128xf32, #tpu.memory_space<vmem>>, %arg5: memref<1x1xf32, #tpu.memory_space<vmem>>) attributes {dimension_semantics = [#tpu.dimension_semantics<arbitrary>], iteration_bounds = array<i64: 1>, scalar_prefetch = 0 : i64, scratch_operands = 2 : i64, tpu.core_type = #tpu.core_type<tc>, window_params = [{transform_indices = @transform_0, window_bounds = array<i64: 8, 128>}, {pipeline_mode = #tpu.pipeline_mode<synchronous>, transform_indices = @transform_1, window_bounds = array<i64: 8, 128>}, {pipeline_mode = #tpu.pipeline_mode<synchronous>, transform_indices = @transform_2, window_bounds = array<i64: 1, 1>}]} {
    %c0_i32 = arith.constant 0 : i32
    %0 = arith.cmpi eq, %arg0, %c0_i32 : i32
    %1 = arith.extui %0 : i1 to i32
    %c0_i32_0 = arith.constant 0 : i32
    %2 = arith.cmpi ne, %1, %c0_i32_0 : i32
    scf.if %2 {
      %cst_22 = arith.constant 0.000000e+00 : f32
      %53 = vector.broadcast %cst_22 : f32 to vector<1x1xf32>
      %c0_23 = arith.constant 0 : index
      %c0_24 = arith.constant 0 : index
      %54 = vector.load %arg5[%c0_23, %c0_24] : memref<1x1xf32, #tpu.memory_space<vmem>>, vector<1x1xf32>
      tpu.vector_store %arg5[%c0_23, %c0_24], %53 {strides = array<i32>} : memref<1x1xf32, #tpu.memory_space<vmem>>, vector<1x1xf32>,
      %c0_25 = arith.constant 0 : index
      %c0_26 = arith.constant 0 : index
      %55 = vector.load %arg2[%c0_25, %c0_26] : memref<8x128xf32, #tpu.memory_space<vmem>>, vector<8x128xf32>
      %56 = arith.mulf %55, %55 : vector<8x128xf32>
      %cst_27 = arith.constant dense<0.000000e+00> : vector<8xf32>
      %57 = vector.multi_reduction <add>, %56, %cst_27 [1] : vector<8x128xf32> to vector<8xf32>
      %58 = vector.shape_cast %57 : vector<8xf32> to vector<8x1xf32>
      %cst_28 = arith.constant 1.000000e-24 : f32
      %59 = vector.broadcast %cst_28 : f32 to vector<8x1xf32>
      %60 = arith.maximumf %58, %59 : vector<8x1xf32>
      %61 = math.rsqrt %60 : vector<8x1xf32>
      %62 = vector.broadcast %61 : vector<8x1xf32> to vector<8x128xf32>
      %63 = arith.mulf %55, %62 : vector<8x128xf32>
      %c0_29 = arith.constant 0 : index
      %c0_30 = arith.constant 0 : index
      %64 = vector.load %arg4[%c0_29, %c0_30] : memref<8x128xf32, #tpu.memory_space<vmem>>, vector<8x128xf32>
      tpu.vector_store %arg4[%c0_29, %c0_30], %63 {strides = array<i32>} : memref<8x128xf32, #tpu.memory_space<vmem>>, vector<8x128xf32>,
    } else {
    }
    %c0 = arith.constant 0 : index
    %c0_1 = arith.constant 0 : index
    %3 = vector.load %arg1[%c0, %c0_1] : memref<8x128xf32, #tpu.memory_space<vmem>>, vector<8x128xf32>
    %4 = arith.mulf %3, %3 : vector<8x128xf32>
    %cst = arith.constant dense<0.000000e+00> : vector<8xf32>
    %5 = vector.multi_reduction <add>, %4, %cst [1] : vector<8x128xf32> to vector<8xf32>
    %6 = vector.shape_cast %5 : vector<8xf32> to vector<8x1xf32>
    %cst_2 = arith.constant 1.000000e-24 : f32
    %7 = vector.broadcast %cst_2 : f32 to vector<8x1xf32>
    %8 = arith.maximumf %6, %7 : vector<8x1xf32>
    %9 = math.rsqrt %8 : vector<8x1xf32>
    %10 = vector.broadcast %9 : vector<8x1xf32> to vector<8x128xf32>
    %11 = arith.mulf %3, %10 : vector<8x128xf32>
    %c0_3 = arith.constant 0 : index
    %c0_4 = arith.constant 0 : index
    %12 = vector.load %arg4[%c0_3, %c0_4] : memref<8x128xf32, #tpu.memory_space<vmem>>, vector<8x128xf32>
    %cst_5 = arith.constant dense<0.000000e+00> : vector<8x8xf32>
    %13 = tpu.matmul %11, %12, %cst_5 {dimension_numbers = #tpu.dot_dimension_numbers<[1], [1], [0], [0], [0, 0, 1, 0], [], []>} : vector<8x128xf32>, vector<8x128xf32>, vector<8x8xf32> -> vector<8x8xf32>
    %cst_6 = arith.constant 2.000000e+00 : f32
    %14 = vector.broadcast %cst_6 : f32 to vector<8x8xf32>
    %15 = arith.mulf %13, %14 : vector<8x8xf32>
    %16 = tpu.iota {dimensions = array<i32: 1>} : vector<8x8xi32>
    %c8_i32 = arith.constant 8 : i32
    %17 = arith.muli %arg0, %c8_i32 : i32
    %18 = tpu.iota {dimensions = array<i32: 0>} : vector<8x8xi32>
    %19 = vector.broadcast %17 : i32 to vector<8x8xi32>
    %20 = arith.addi %19, %18 : vector<8x8xi32>
    %c8_i32_7 = arith.constant 8 : i32
    %21 = vector.broadcast %c8_i32_7 : i32 to vector<8x8xi32>
    %22 = arith.cmpi slt, %16, %21 : vector<8x8xi32>
    %cst_8 = arith.constant -1.000000e+30 : f32
    %23 = vector.broadcast %cst_8 : f32 to vector<8x8xf32>
    %24 = arith.select %22, %15, %23 : vector<8x8xi1>, vector<8x8xf32>
    %cst_9 = arith.constant dense<0xFF800000> : vector<8xf32>
    %25 = vector.multi_reduction <maximumf>, %24, %cst_9 [1] : vector<8x8xf32> to vector<8xf32>
    %26 = vector.shape_cast %25 : vector<8xf32> to vector<8x1xf32>
    %27 = vector.broadcast %26 : vector<8x1xf32> to vector<8x8xf32>
    %28 = arith.subf %24, %27 : vector<8x8xf32>
    %29 = math.exp %28 : vector<8x8xf32>
    %cst_10 = arith.constant dense<0.000000e+00> : vector<8xf32>
    %30 = vector.multi_reduction <add>, %29, %cst_10 [1] : vector<8x8xf32> to vector<8xf32>
    %31 = vector.shape_cast %30 : vector<8xf32> to vector<8x1xf32>
    %32 = math.log %31 : vector<8x1xf32>
    %33 = arith.cmpi eq, %16, %20 : vector<8x8xi32>
    %cst_11 = arith.constant 0.000000e+00 : f32
    %34 = vector.broadcast %cst_11 : f32 to vector<8x8xf32>
    %35 = arith.select %33, %24, %34 : vector<8x8xi1>, vector<8x8xf32>
    %cst_12 = arith.constant dense<0.000000e+00> : vector<8xf32>
    %36 = vector.multi_reduction <add>, %35, %cst_12 [1] : vector<8x8xf32> to vector<8xf32>
    %37 = vector.shape_cast %36 : vector<8xf32> to vector<8x1xf32>
    %38 = arith.subf %26, %37 : vector<8x1xf32>
    %39 = arith.addf %38, %32 : vector<8x1xf32>
    %40 = vector.extract_strided_slice %20 {offsets = [0, 0], sizes = [8, 1], strides = [1, 1]} : vector<8x8xi32> to vector<8x1xi32>
    %c8_i32_13 = arith.constant 8 : i32
    %41 = vector.broadcast %c8_i32_13 : i32 to vector<8x1xi32>
    %42 = arith.cmpi slt, %40, %41 : vector<8x1xi32>
    %c0_14 = arith.constant 0 : index
    %c0_15 = arith.constant 0 : index
    %43 = vector.load %arg5[%c0_14, %c0_15] : memref<1x1xf32, #tpu.memory_space<vmem>>, vector<1x1xf32>
    %cst_16 = arith.constant 0.000000e+00 : f32
    %44 = vector.broadcast %cst_16 : f32 to vector<8x1xf32>
    %45 = arith.select %42, %39, %44 : vector<8x1xi1>, vector<8x1xf32>
    %cst_17 = arith.constant dense<0.000000e+00> : vector<1xf32>
    %46 = vector.multi_reduction <add>, %45, %cst_17 [0] : vector<8x1xf32> to vector<1xf32>
    %47 = vector.shape_cast %46 : vector<1xf32> to vector<1x1xf32>
    %48 = arith.addf %43, %47 : vector<1x1xf32>
    %c0_18 = arith.constant 0 : index
    %c0_19 = arith.constant 0 : index
    %49 = vector.load %arg5[%c0_18, %c0_19] : memref<1x1xf32, #tpu.memory_space<vmem>>, vector<1x1xf32>
    tpu.vector_store %arg5[%c0_18, %c0_19], %48 {strides = array<i32>} : memref<1x1xf32, #tpu.memory_space<vmem>>, vector<1x1xf32>,
    %c0_i32_20 = arith.constant 0 : i32
    %50 = arith.cmpi eq, %arg0, %c0_i32_20 : i32
    %51 = arith.extui %50 : i1 to i32
    %c0_i32_21 = arith.constant 0 : i32
    %52 = arith.cmpi ne, %51, %c0_i32_21 : i32
    scf.if %52 {
      %c0_22 = arith.constant 0 : index
      %c0_23 = arith.constant 0 : index
      %53 = vector.load %arg5[%c0_22, %c0_23] : memref<1x1xf32, #tpu.memory_space<vmem>>, vector<1x1xf32>
      %cst_24 = arith.constant 1.250000e-01 : f32
      %54 = vector.broadcast %cst_24 : f32 to vector<1x1xf32>
      %55 = arith.mulf %53, %54 : vector<1x1xf32>
      %c0_25 = arith.constant 0 : index
      %c0_26 = arith.constant 0 : index
      %56 = vector.load %arg3[%c0_25, %c0_26] : memref<1x1xf32, #tpu.memory_space<vmem>>, vector<1x1xf32>
      tpu.vector_store %arg3[%c0_25, %c0_26], %55 {strides = array<i32>} : memref<1x1xf32, #tpu.memory_space<vmem>>, vector<1x1xf32>,
    } else {
    }
    return
  }
  func.func @transform_0(%arg0: i32) -> (i32, i32) {
    %c0_i32 = arith.constant 0 : i32
    %c0_i32_0 = arith.constant 0 : i32
    return %arg0, %c0_i32 : i32, i32
  }
  func.func @transform_1(%arg0: i32) -> (i32, i32) {
    %c0_i32 = arith.constant 0 : i32
    %c0_i32_0 = arith.constant 0 : i32
    %c0_i32_1 = arith.constant 0 : i32
    return %c0_i32, %c0_i32_0 : i32, i32
  }
  func.func @transform_2(%arg0: i32) -> (i32, i32) {
    %c0_i32 = arith.constant 0 : i32
    %c0_i32_0 = arith.constant 0 : i32
    %c0_i32_1 = arith.constant 0 : i32
    return %c0_i32, %c0_i32_0 : i32, i32
  }
}

</mosaic_0001>

<llo_original>
// kernel: tpu_custom_call.1
$region0: #{tpu_custom_call.1}
  #allocation0 [shape = 'u32[]', space=smem, size = 0x4, offset = 0x4, fixed_abs, tag = 'smem constant byte address 0x4 - core index']
  #allocation1 [shape = 'u32[144,128]{1,0:T(1,128)}', space=vmem, size = 0x12000, scoped, tag = 'internal scratch']
  #allocation2 [shape = 'f32[8,128]{1,0:T(8,128)}', space=vmem, size = 0x1000, scoped, tag = 'scratch operand']
  #allocation3 [shape = 'f32[1,1]{1,0:T(1,128)}', space=vmem, size = 0x200, scoped, tag = 'scratch operand']
  %s0 = inlined_call_operand.hbm [shape: f32[8,128], index: 0, kind: input, shape index: {}]
  %s1 = inlined_call_operand.hbm [shape: f32[8,128], index: 1, kind: input, shape index: {}]
  %s2 = inlined_call_operand.hbm [shape: f32[1,1], index: 2, kind: output, shape index: {}]
  %s3 = sld [smem:[#allocation0]]
  $region34: #{tpu_custom_call.1} parent=0
    _
  %s5 = ssub.s32 1, %s3
  %s6 = scalar_select 0, %s5, %s3
  $region1: #{tpu_custom_call.1} parent=0
    #allocation4 [shape = 'u8[4096]{0}', space=vmem, size = 0x1000, scoped, tag = 'input window, operand 0, single buffered']
    #allocation5 [shape = 's32[1]{0}', space=sflag, size = 0x4, scoped, tag = 'scoped memory for tpu_custom_call.1']
    #allocation6 [shape = 's32[1]{0}', space=sflag, size = 0x4, scoped, tag = 'scoped memory for tpu_custom_call.1']
    #allocation7 [shape = 'u8[4096]{0}', space=vmem, size = 0x1000, scoped, tag = 'input window, operand 1, single buffered']
    #allocation8 [shape = 's32[1]{0}', space=sflag, size = 0x4, scoped, tag = 'scoped memory for tpu_custom_call.1']
    #allocation9 [shape = 'u8[512]{0}', space=vmem, size = 0x400, scoped, tag = 'output window, operand 0, single buffered']
    %7 = vsyncpa [#allocation5], 0
    %8 = vsyncpa [#allocation8], 0
    %9 = vsyncpa [#allocation6], 0
    // Predicated region
    $region2: #{tpu_custom_call.1} parent=1 // pred_check
      _
    $region3: #{tpu_custom_call.1} parent=1 // pred_check_branch
      %11 = sbr.rel (0) target = $region5
    $region4: #{tpu_custom_call.1} parent=1 // pred_region
      %s13 = ssub.s32 128, 128
      %14 = vsyncadd [#allocation5], %s13
      %s16 = sshll.u32 [#allocation4], 4
      %s17 = int_to_ptr.vmem [resolvable:$true] %s16
      %19 = dma.hbm_to_vmem [thread:$0]  %s0, 128, %s17, [#allocation5]
    $region5: #{tpu_custom_call.1} parent=1 // pred_fallthru
      _
    // Predicated region
    $region6: #{tpu_custom_call.1} parent=1 // pred_check
      _
    $region7: #{tpu_custom_call.1} parent=1 // pred_check_branch
      %21 = sbr.rel (0) target = $region9
    $region8: #{tpu_custom_call.1} parent=1 // pred_region
      %s23 = ssub.s32 128, 128
      %24 = vsyncadd [#allocation8], %s23
      %s26 = sshll.u32 [#allocation7], 4
      %s27 = int_to_ptr.vmem [resolvable:$true] %s26
      %29 = dma.hbm_to_vmem [thread:$0]  %s1, 128, %s27, [#allocation8]
    $region9: #{tpu_custom_call.1} parent=1 // pred_fallthru
      _
    // Predicated region
    $region10: #{tpu_custom_call.1} parent=1 // pred_check
      _
    $region11: #{tpu_custom_call.1} parent=1 // pred_check_branch
      %31 = sbr.rel (0) target = $region13
    $region12: #{tpu_custom_call.1} parent=1 // pred_region
      %32 = dma.done [#allocation5], 128
    $region13: #{tpu_custom_call.1} parent=1 // pred_fallthru
      _
    // Predicated region
    $region14: #{tpu_custom_call.1} parent=1 // pred_check
      _
    $region15: #{tpu_custom_call.1} parent=1 // pred_check_branch
      %34 = sbr.rel (0) target = $region17
    $region16: #{tpu_custom_call.1} parent=1 // pred_region
      %35 = dma.done [#allocation8], 128
    $region17: #{tpu_custom_call.1} parent=1 // pred_fallthru
      _
    %p36 = scmp.eq.s32.totalorder 0, 0
    // Predicated region
    $region18: #{tpu_custom_call.1} parent=1 // pred_check
      %p37 = pneg %p36
    $region19: #{tpu_custom_call.1} parent=1 // pred_check_branch
      %39 = sbr.rel (%p37) target = $region21
    $region20: #{tpu_custom_call.1} parent=1 // pred_region
      %vm40 = vcmask 0
      %41 = vst.msk [vmem:[#allocation3] sm:$0x1] %vm40, 0.0
      %v42 = vld [vmem:[#allocation7] sm:$0xff]
      %v43 = vmul.f32 %v42, %v42
      %44 = vadd.xlane.f32.xlu0 %v43
      %v45 = vpop.xlane.xlu0 %44
      %v46 = vmax.f32 %v45, 1e-24
      %v47 = vrsqrt.pop %v46
      %v48 = vmul.f32 %v42, %v47
      %49 = vst [vmem:[#allocation2] sm:$0xff] %v48
    $region21: #{tpu_custom_call.1} parent=1 // pred_fallthru
      _
    %v50 = vld [vmem:[#allocation4] sm:$0xff]
    %v51 = vmul.f32 %v50, %v50
    %52 = vadd.xlane.f32.xlu0 %v51
    %v53 = vpop.xlane.xlu0 %52
    %v54 = vmax.f32 %v53, 1e-24
    %v55 = vrsqrt.pop %v54
    %v56 = vmul.f32 %v50, %v55
    %v57 = vld [vmem:[#allocation2] sm:$0xff]
    %58 = vmatprep.subr.mxu0 0.0
    %59 = vmatpush1.xpose.msra.mxu0 %v57
    %60 = vmatprep.subr.mxu0 0.0
    %61 = vmatpush1.xpose.msra.mxu0 0.0
    %62 = vmatprep.subr.mxu0 0.0
    %63 = vmatpush1.xpose.msra.mxu0 0.0
    %64 = vmatprep.subr.mxu0 0.0
    %65 = vmatpush1.xpose.msra.mxu0 0.0
    %66 = vmatprep.subr.mxu0 0.0
    %67 = vmatpush1.xpose.msra.mxu0 0.0
    %68 = vmatprep.subr.mxu0 0.0
    %69 = vmatpush1.xpose.msra.mxu0 0.0
    %70 = vmatprep.subr.mxu0 0.0
    %71 = vmatpush1.xpose.msra.mxu0 0.0
    %72 = vmatprep.subr.mxu0 0.0
    %73 = vmatpush1.xpose.msra.mxu0 0.0
    %74 = vmatprep.subr.mxu0 0.0
    %75 = vmatpush1.xpose.msra.mxu0 0.0
    %76 = vmatprep.subr.mxu0 0.0
    %77 = vmatpush1.xpose.msra.mxu0 0.0
    %78 = vmatprep.subr.mxu0 0.0
    %79 = vmatpush1.xpose.msra.mxu0 0.0
    %80 = vmatprep.subr.mxu0 0.0
    %81 = vmatpush1.xpose.msra.mxu0 0.0
    %82 = vmatprep.subr.mxu0 0.0
    %83 = vmatpush1.xpose.msra.mxu0 0.0
    %84 = vmatprep.subr.mxu0 0.0
    %85 = vmatpush1.xpose.msra.mxu0 0.0
    %86 = vmatprep.subr.mxu0 0.0
    %87 = vmatpush1.xpose.msra.mxu0 0.0
    %88 = vmatprep.subr.mxu0 0.0
    %89 = vmatpush1.xpose.msra.mxu0 0.0
    %90 = vmatprep.subr.mxu0 0.0
    %91 = vmatpush1.xpose.msra.mxu0 0.0
    %92 = vmatprep.subr.mxu0 0.0
    %93 = vmatpush1.xpose.msra.mxu0 0.0
    %94 = vmatprep.subr.mxu0 0.0
    %95 = vmatpush1.xpose.msra.mxu0 0.0
    %96 = vmatprep.subr.mxu0 0.0
    %97 = vmatpush1.xpose.msra.mxu0 0.0
    %98 = vmatprep.subr.mxu0 0.0
    %99 = vmatpush1.xpose.msra.mxu0 0.0
    %100 = vmatprep.subr.mxu0 0.0
    %101 = vmatpush1.xpose.msra.mxu0 0.0
    %102 = vmatprep.subr.mxu0 0.0
    %103 = vmatpush1.xpose.msra.mxu0 0.0
    %104 = vmatprep.subr.mxu0 0.0
    %105 = vmatpush1.xpose.msra.mxu0 0.0
    %106 = vmatprep.subr.mxu0 0.0
    %107 = vmatpush1.xpose.msra.mxu0 0.0
    %108 = vmatprep.subr.mxu0 0.0
    %109 = vmatpush1.xpose.msra.mxu0 0.0
    %110 = vmatprep.subr.mxu0 0.0
    %111 = vmatpush1.xpose.msra.mxu0 0.0
    %112 = vmatprep.subr.mxu0 0.0
    %113 = vmatpush1.xpose.msra.mxu0 0.0
    %114 = vmatprep.subr.mxu0 0.0
    %115 = vmatpush1.xpose.msra.mxu0 0.0
    %116 = vmatprep.subr.mxu0 0.0
    %117 = vmatpush1.xpose.msra.mxu0 0.0
    %118 = vmatprep.subr.mxu0 0.0
    %119 = vmatpush1.xpose.msra.mxu0 0.0
    %120 = vmatprep.subr.mxu0 0.0
    %121 = vmatpush1.xpose.msra.mxu0 0.0
    %122 = vmatprep.mubr.f32.mxu0 0.0
    %123 = vmatmul.mubr.f32.gmra.mrb[0].mxu0 %v56
    %v124 = vpop.f32.mrb[0].mxu0
    %v125 = vadd.f32 0.0, %v124
    %v126 = vpop.f32.mrb[0].mxu0
    %127 = vdwg.mxu0
    %v128 = vmul.f32 %v125, 2.0
    %v129 = vlaneseq
    %v130 = vand.u32 %v129, 127
    %s131 = smul.u32 0, 8
    %v132 = vlaneseq
    %v133 = vshrl.u32 %v132, 7
    %v134 = vstv %s131
    %v135 = vadd.s32 %v134, %v133
    %vm136 = vcmp.lt.s32.totalorder %v130, 8
    %v137 = vsel %vm136, %v128, -1e+30
    %vm138 = vcmask 64512
    %v139 = vsel %vm138, %v137, -inf
    %140 = vmax.xlane.f32.xlu0 %v139
    %v141 = vpop.xlane.xlu0 %140
    %v142 = vsub.f32 %v137, %v141
    %v143 = vmul.f32 %v142, 1.442695
    %v144 = vpow.pop %v143
    %v145 = vsel %vm138, %v144, 0.0
    %146 = vadd.xlane.f32.xlu0 %v145
    %v147 = vpop.xlane.xlu0 %146
    %v148 = vlog2.pop %v147
    %v149 = vmul.f32 %v148, 0.6931472
    %vm150 = vcmp.eq.s32.totalorder %v130, %v135
    %v151 = vsel %vm150, %v137, 0.0
    %v152 = vsel %vm138, %v151, 0.0
    %153 = vadd.xlane.f32.xlu0 %v152
    %v154 = vpop.xlane.xlu0 %153
    %v155 = vsub.f32 %v141, %v154
    %v156 = vadd.f32 %v155, %v149
    %vm157 = vcmp.lt.s32.totalorder %v135, 8
    %v158 = vld [vmem:[#allocation3] sm:$0x1]
    %v159 = vsel %vm157, %v156, 0.0
    %v160 = vrot.slane %v159, 4
    %v161 = vadd.f32 %v159, %v160
    %v162 = vrot.slane %v161, 2
    %v163 = vadd.f32 %v161, %v162
    %v164 = vrot.slane %v163, 1
    %v165 = vadd.f32 %v163, %v164
    %v166 = vadd.f32 %v158, %v165
    %vm167 = vcmask 0
    %168 = vst.msk [vmem:[#allocation3] sm:$0x1] %vm167, %v166
    // Predicated region
    $region22: #{tpu_custom_call.1} parent=1 // pred_check
      %p169 = pneg %p36
    $region23: #{tpu_custom_call.1} parent=1 // pred_check_branch
      %171 = sbr.rel (%p169) target = $region25
    $region24: #{tpu_custom_call.1} parent=1 // pred_region
      %v172 = vld [vmem:[#allocation3] sm:$0x1]
      %v173 = vmul.f32 %v172, 0.125
      %174 = vst.msk [vmem:[#allocation9] sm:$0x1] %vm167, %v173
    $region25: #{tpu_custom_call.1} parent=1 // pred_fallthru
      _
    // Predicated region
    $region26: #{tpu_custom_call.1} parent=1 // pred_check
      _
    $region27: #{tpu_custom_call.1} parent=1 // pred_check_branch
      %176 = sbr.rel (0) target = $region29
    $region28: #{tpu_custom_call.1} parent=1 // pred_region
      %s178 = ssub.s32 16, 16
      %179 = vsyncadd [#allocation6], %s178
      %s181 = sshll.u32 [#allocation9], 4
      %s182 = int_to_ptr.vmem [resolvable:$true] %s181
      %184 = dma.vmem_to_hbm [thread:$0]  %s182, 16, %s2, [#allocation6]
    $region29: #{tpu_custom_call.1} parent=1 // pred_fallthru
      _
    // Predicated region
    $region30: #{tpu_custom_call.1} parent=1 // pred_check
      _
    $region31: #{tpu_custom_call.1} parent=1 // pred_check_branch
      %186 = sbr.rel (0) target = $region33
    $region32: #{tpu_custom_call.1} parent=1 // pred_region
      %187 = dma.done [#allocation6], 16
    $region33: #{tpu_custom_call.1} parent=1 // pred_fallthru
      _
    %188 = vsyncpa [#allocation5], 1
    %189 = vsyncpa [#allocation8], 1
    %190 = vsyncpa [#allocation6], 1

</llo_original>
